<compile_context>
chip_gen: v5e
topology: v5e:2x2
jax: 0.10.0
libtpu: 0.0.40
codegen_flags: <defaults>
</compile_context>

<pallas_src>
import functools

import jax
import jax.numpy as jnp
from jax.experimental import pallas as pl
from jax.experimental.pallas import tpu as pltpu

LANE = 128          # vreg lane width — pad every feature axis to this
MAX_BATCH_TILE = 512


def _round_up(x, m):
    return (x + m - 1) // m * m


def policy_kernel(x_ref, w1_ref, b1_ref, w2_ref, b2_ref, w3_ref, b3_ref,
                  mean_ref):
    """One batch tile: mean = tanh(tanh(x@W1+b1)@W2+b2)@W3+b3 (all lane-dense)."""
    x = x_ref[...]                                            # (TB, 128) bf16

    # fc1 + tanh  (bf16 operands, f32 accumulation on the MXU)
    h1 = jnp.dot(x, w1_ref[...], preferred_element_type=jnp.float32)
    h1 = jnp.tanh(h1 + b1_ref[...]).astype(jnp.bfloat16)      # pad lanes stay 0

    # fc2 + tanh
    h2 = jnp.dot(h1, w2_ref[...], preferred_element_type=jnp.float32)
    h2 = jnp.tanh(h2 + b2_ref[...]).astype(jnp.bfloat16)

    # fc3 (action mean, no activation)
    mean = jnp.dot(h2, w3_ref[...], preferred_element_type=jnp.float32)
    mean_ref[...] = mean + b3_ref[...]


@functools.partial(jax.jit, static_argnames=())
def policy_forward(x, params):
    """Returns (action_mean (B, A), sigma (A,)) — the Normal(mean, sigma) params."""
    w1, b1, w2, b2, w3, b3, sigma_param = params
    B, S = x.shape
    H = w1.shape[1]
    A = w3.shape[1]

    S_pad = _round_up(max(S, 1), LANE)
    H_pad = _round_up(max(H, 1), LANE)
    A_pad = _round_up(max(A, 1), LANE)

    # Batch tile: multiple of 8 sublanes, capped so VMEM stays tiny and
    # generation-portable (v5e 16 MiB default scoped / v7x 64 MiB physical).
    tb = min(MAX_BATCH_TILE, _round_up(B, 8))
    B_pad = _round_up(B, tb)
    n_tiles = B_pad // tb

    # --- lane-dense, zero-padded operands -----------------------------------
    xp = jnp.zeros((B_pad, S_pad), jnp.bfloat16).at[:B, :S].set(
        x.astype(jnp.bfloat16))
    w1p = jnp.zeros((S_pad, H_pad), jnp.bfloat16).at[:S, :H].set(
        w1.astype(jnp.bfloat16))
    w2p = jnp.zeros((H_pad, H_pad), jnp.bfloat16).at[:H, :H].set(
        w2.astype(jnp.bfloat16))
    w3p = jnp.zeros((H_pad, A_pad), jnp.bfloat16).at[:H, :A].set(
        w3.astype(jnp.bfloat16))
    b1p = jnp.zeros((1, H_pad), jnp.float32).at[:, :H].set(b1)
    b2p = jnp.zeros((1, H_pad), jnp.float32).at[:, :H].set(b2)
    b3p = jnp.zeros((1, A_pad), jnp.float32).at[:, :A].set(b3)

    weight_bytes = (w1p.size + w2p.size + w3p.size) * 2 + (b1p.size + b2p.size + b3p.size) * 4
    cost = pl.CostEstimate(
        flops=2 * B_pad * (S_pad * H_pad + H_pad * H_pad + H_pad * A_pad),
        transcendentals=2 * B_pad * H_pad,
        bytes_accessed=xp.size * 2 + weight_bytes + B_pad * A_pad * 4,
    )

    grid_spec = pltpu.PrefetchScalarGridSpec(
        num_scalar_prefetch=0,
        grid=(n_tiles,),
        in_specs=[
            pl.BlockSpec((tb, S_pad), lambda i: (i, 0)),      # x tile (streams)
            pl.BlockSpec((S_pad, H_pad), lambda i: (0, 0)),   # W1 (resident)
            pl.BlockSpec((1, H_pad), lambda i: (0, 0)),       # b1
            pl.BlockSpec((H_pad, H_pad), lambda i: (0, 0)),   # W2
            pl.BlockSpec((1, H_pad), lambda i: (0, 0)),       # b2
            pl.BlockSpec((H_pad, A_pad), lambda i: (0, 0)),   # W3
            pl.BlockSpec((1, A_pad), lambda i: (0, 0)),       # b3
        ],
        out_specs=pl.BlockSpec((tb, A_pad), lambda i: (i, 0)),
    )

    mean_pad = pl.pallas_call(
        policy_kernel,
        out_shape=jax.ShapeDtypeStruct((B_pad, A_pad), jnp.float32),
        grid_spec=grid_spec,
        compiler_params=pltpu.CompilerParams(
            dimension_semantics=("parallel",),      # v7x: both TCs take tiles
            vmem_limit_bytes=32 * 1024 * 1024,
        ),
        cost_estimate=cost,
    )(xp, w1p, b1p, w2p, b2p, w3p, b3p)

    mean = mean_pad[:B, :A]
    # Parameter-only, batch-invariant: no need to burn a kernel output on it.
    sigma = jax.nn.softplus(sigma_param)[0]
    return mean, sigma


def init_policy_params(key, state_space, action_space, hidden=64):
    """Matches Policy.init_weights(): weights ~ N(0, 1), biases = 0, sigma = 0.5."""
    k1, k2, k3 = jax.random.split(key, 3)
    w1 = jax.random.normal(k1, (state_space, hidden), dtype=jnp.float32)
    b1 = jnp.zeros((1, hidden), dtype=jnp.float32)
    w2 = jax.random.normal(k2, (hidden, hidden), dtype=jnp.float32)
    b2 = jnp.zeros((1, hidden), dtype=jnp.float32)
    w3 = jax.random.normal(k3, (hidden, action_space), dtype=jnp.float32)
    b3 = jnp.zeros((1, action_space), dtype=jnp.float32)
    sigma = jnp.zeros((1, action_space), dtype=jnp.float32) + 0.5
    return (w1, b1, w2, b2, w3, b3, sigma)


if __name__ == "__main__":
    state_space = 8
    action_space = 4
    batch = 2

    key = jax.random.PRNGKey(0)
    k_params, k_x = jax.random.split(key)

    params = init_policy_params(k_params, state_space, action_space, hidden=64)
    x = jax.random.normal(k_x, (batch, state_space), dtype=jnp.float32)

    mean, sigma = policy_forward(x, params)
    jax.block_until_ready((mean, sigma))

    # Reference in plain JAX with matching bf16-operand / f32-accum precision.
    w1, b1, w2, b2, w3, b3, sig_p = params
    xb = x.astype(jnp.bfloat16)
    h1 = jnp.tanh(jnp.dot(xb, w1.astype(jnp.bfloat16),
                          preferred_element_type=jnp.float32) + b1
                  ).astype(jnp.bfloat16)
    h2 = jnp.tanh(jnp.dot(h1, w2.astype(jnp.bfloat16),
                          preferred_element_type=jnp.float32) + b2
                  ).astype(jnp.bfloat16)
    mean_ref = jnp.dot(h2, w3.astype(jnp.bfloat16),
                       preferred_element_type=jnp.float32) + b3
    sigma_ref = jax.nn.softplus(sig_p)[0]

    assert mean.shape == (batch, action_space)
    assert sigma.shape == (action_space,)
    assert jnp.allclose(mean, mean_ref, atol=2e-2, rtol=2e-2), (
        jnp.max(jnp.abs(mean - mean_ref)))
    assert jnp.allclose(sigma, sigma_ref, atol=1e-6, rtol=1e-6)

    print("KERNEL_OK")
</pallas_src>

<mosaic_0001>
module attributes {stable_mosaic.version = 11 : i64} {
  func.func @policy_kernel(%arg0: i32, %arg1: memref<8x128xbf16, #tpu.memory_space<vmem>>, %arg2: memref<128x128xbf16, #tpu.memory_space<vmem>>, %arg3: memref<1x128xf32, #tpu.memory_space<vmem>>, %arg4: memref<128x128xbf16, #tpu.memory_space<vmem>>, %arg5: memref<1x128xf32, #tpu.memory_space<vmem>>, %arg6: memref<128x128xbf16, #tpu.memory_space<vmem>>, %arg7: memref<1x128xf32, #tpu.memory_space<vmem>>, %arg8: memref<8x128xf32, #tpu.memory_space<vmem>>) attributes {dimension_semantics = [#tpu.dimension_semantics<parallel>], iteration_bounds = array<i64: 1>, scalar_prefetch = 0 : i64, scratch_operands = 0 : i64, tpu.core_type = #tpu.core_type<tc>, window_params = [{transform_indices = @transform_0, window_bounds = array<i64: 8, 128>}, {pipeline_mode = #tpu.pipeline_mode<synchronous>, transform_indices = @transform_1, window_bounds = array<i64: 128, 128>}, {pipeline_mode = #tpu.pipeline_mode<synchronous>, transform_indices = @transform_2, window_bounds = array<i64: 1, 128>}, {pipeline_mode = #tpu.pipeline_mode<synchronous>, transform_indices = @transform_3, window_bounds = array<i64: 128, 128>}, {pipeline_mode = #tpu.pipeline_mode<synchronous>, transform_indices = @transform_4, window_bounds = array<i64: 1, 128>}, {pipeline_mode = #tpu.pipeline_mode<synchronous>, transform_indices = @transform_5, window_bounds = array<i64: 128, 128>}, {pipeline_mode = #tpu.pipeline_mode<synchronous>, transform_indices = @transform_6, window_bounds = array<i64: 1, 128>}, {transform_indices = @transform_7, window_bounds = array<i64: 8, 128>}]} {
    %c0 = arith.constant 0 : index
    %c0_0 = arith.constant 0 : index
    %0 = vector.load %arg1[%c0, %c0_0] : memref<8x128xbf16, #tpu.memory_space<vmem>>, vector<8x128xbf16>
    %c0_1 = arith.constant 0 : index
    %c0_2 = arith.constant 0 : index
    %1 = vector.load %arg2[%c0_1, %c0_2] : memref<128x128xbf16, #tpu.memory_space<vmem>>, vector<128x128xbf16>
    %cst = arith.constant dense<0.000000e+00> : vector<8x128xf32>
    %2 = tpu.matmul %0, %1, %cst {dimension_numbers = #tpu.dot_dimension_numbers<[1], [0], [0], [1], [0, 0, 1, 1], [], []>} : vector<8x128xbf16>, vector<128x128xbf16>, vector<8x128xf32> -> vector<8x128xf32>
    %c0_3 = arith.constant 0 : index
    %c0_4 = arith.constant 0 : index
    %3 = vector.load %arg3[%c0_3, %c0_4] : memref<1x128xf32, #tpu.memory_space<vmem>>, vector<1x128xf32>
    %4 = vector.broadcast %3 : vector<1x128xf32> to vector<8x128xf32>
    %5 = arith.addf %2, %4 : vector<8x128xf32>
    %6 = math.tanh %5 : vector<8x128xf32>
    %7 = arith.truncf %6 : vector<8x128xf32> to vector<8x128xbf16>
    %c0_5 = arith.constant 0 : index
    %c0_6 = arith.constant 0 : index
    %8 = vector.load %arg4[%c0_5, %c0_6] : memref<128x128xbf16, #tpu.memory_space<vmem>>, vector<128x128xbf16>
    %cst_7 = arith.constant dense<0.000000e+00> : vector<8x128xf32>
    %9 = tpu.matmul %7, %8, %cst_7 {dimension_numbers = #tpu.dot_dimension_numbers<[1], [0], [0], [1], [0, 0, 1, 1], [], []>} : vector<8x128xbf16>, vector<128x128xbf16>, vector<8x128xf32> -> vector<8x128xf32>
    %c0_8 = arith.constant 0 : index
    %c0_9 = arith.constant 0 : index
    %10 = vector.load %arg5[%c0_8, %c0_9] : memref<1x128xf32, #tpu.memory_space<vmem>>, vector<1x128xf32>
    %11 = vector.broadcast %10 : vector<1x128xf32> to vector<8x128xf32>
    %12 = arith.addf %9, %11 : vector<8x128xf32>
    %13 = math.tanh %12 : vector<8x128xf32>
    %14 = arith.truncf %13 : vector<8x128xf32> to vector<8x128xbf16>
    %c0_10 = arith.constant 0 : index
    %c0_11 = arith.constant 0 : index
    %15 = vector.load %arg6[%c0_10, %c0_11] : memref<128x128xbf16, #tpu.memory_space<vmem>>, vector<128x128xbf16>
    %cst_12 = arith.constant dense<0.000000e+00> : vector<8x128xf32>
    %16 = tpu.matmul %14, %15, %cst_12 {dimension_numbers = #tpu.dot_dimension_numbers<[1], [0], [0], [1], [0, 0, 1, 1], [], []>} : vector<8x128xbf16>, vector<128x128xbf16>, vector<8x128xf32> -> vector<8x128xf32>
    %c0_13 = arith.constant 0 : index
    %c0_14 = arith.constant 0 : index
    %17 = vector.load %arg7[%c0_13, %c0_14] : memref<1x128xf32, #tpu.memory_space<vmem>>, vector<1x128xf32>
    %18 = vector.broadcast %17 : vector<1x128xf32> to vector<8x128xf32>
    %19 = arith.addf %16, %18 : vector<8x128xf32>
    %c0_15 = arith.constant 0 : index
    %c0_16 = arith.constant 0 : index
    %20 = vector.load %arg8[%c0_15, %c0_16] : memref<8x128xf32, #tpu.memory_space<vmem>>, vector<8x128xf32>
    tpu.vector_store %arg8[%c0_15, %c0_16], %19 {strides = array<i32>} : memref<8x128xf32, #tpu.memory_space<vmem>>, vector<8x128xf32>,
    return
  }
  func.func @transform_0(%arg0: i32) -> (i32, i32) {
    %c0_i32 = arith.constant 0 : i32
    %c0_i32_0 = arith.constant 0 : i32
    return %arg0, %c0_i32 : i32, i32
  }
  func.func @transform_1(%arg0: i32) -> (i32, i32) {
    %c0_i32 = arith.constant 0 : i32
    %c0_i32_0 = arith.constant 0 : i32
    %c0_i32_1 = arith.constant 0 : i32
    return %c0_i32, %c0_i32_0 : i32, i32
  }
  func.func @transform_2(%arg0: i32) -> (i32, i32) {
    %c0_i32 = arith.constant 0 : i32
    %c0_i32_0 = arith.constant 0 : i32
    %c0_i32_1 = arith.constant 0 : i32
    return %c0_i32, %c0_i32_0 : i32, i32
  }
  func.func @transform_3(%arg0: i32) -> (i32, i32) {
    %c0_i32 = arith.constant 0 : i32
    %c0_i32_0 = arith.constant 0 : i32
    %c0_i32_1 = arith.constant 0 : i32
    return %c0_i32, %c0_i32_0 : i32, i32
  }
  func.func @transform_4(%arg0: i32) -> (i32, i32) {
    %c0_i32 = arith.constant 0 : i32
    %c0_i32_0 = arith.constant 0 : i32
    %c0_i32_1 = arith.constant 0 : i32
    return %c0_i32, %c0_i32_0 : i32, i32
  }
  func.func @transform_5(%arg0: i32) -> (i32, i32) {
    %c0_i32 = arith.constant 0 : i32
    %c0_i32_0 = arith.constant 0 : i32
    %c0_i32_1 = arith.constant 0 : i32
    return %c0_i32, %c0_i32_0 : i32, i32
  }
  func.func @transform_6(%arg0: i32) -> (i32, i32) {
    %c0_i32 = arith.constant 0 : i32
    %c0_i32_0 = arith.constant 0 : i32
    %c0_i32_1 = arith.constant 0 : i32
    return %c0_i32, %c0_i32_0 : i32, i32
  }
  func.func @transform_7(%arg0: i32) -> (i32, i32) {
    %c0_i32 = arith.constant 0 : i32
    %c0_i32_0 = arith.constant 0 : i32
    return %arg0, %c0_i32 : i32, i32
  }
}

</mosaic_0001>

<llo_original>
// kernel: policy_forward.1
$region0: #{policy_forward.1}
  #allocation0 [shape = 'u32[]', space=smem, size = 0x4, offset = 0x4, fixed_abs, tag = 'smem constant byte address 0x4 - core index']
  #allocation1 [shape = 'u32[72,128]{1,0:T(1,128)}', space=vmem, size = 0x9000, scoped, tag = 'internal scratch']
  %s0 = inlined_call_operand.vmem [shape: bf16[8,128], index: 0, kind: input, shape index: {}]
  %s1 = inlined_call_operand.vmem [shape: bf16[128,128], index: 1, kind: input, shape index: {}]
  %s2 = inlined_call_operand.vmem [shape: f32[1,128], index: 2, kind: input, shape index: {}]
  %s3 = inlined_call_operand.vmem [shape: bf16[128,128], index: 3, kind: input, shape index: {}]
  %s4 = inlined_call_operand.vmem [shape: f32[1,128], index: 4, kind: input, shape index: {}]
  %s5 = inlined_call_operand.vmem [shape: bf16[128,128], index: 5, kind: input, shape index: {}]
  %s6 = inlined_call_operand.vmem [shape: f32[1,128], index: 6, kind: input, shape index: {}]
  %s7 = inlined_call_operand.vmem [shape: f32[8,128], index: 7, kind: output, shape index: {}]
  %s8 = sld [smem:[#allocation0]]
  $region38: #{policy_forward.1} parent=0
    _
  %s10 = ssub.s32 1, %s8
  %s11 = scalar_select 0, %s10, %s8
  // Predicated region
  $region2: #{policy_forward.1} parent=0 // pred_check
    _
  $region3: #{policy_forward.1} parent=0 // pred_check_branch
    %13 = sbr.rel (0) target = $region5
  $region4: #{policy_forward.1} parent=0 // pred_region
    _
  $region5: #{policy_forward.1} parent=0 // pred_fallthru
    _
  // Predicated region
  $region6: #{policy_forward.1} parent=0 // pred_check
    _
  $region7: #{policy_forward.1} parent=0 // pred_check_branch
    %15 = sbr.rel (0) target = $region9
  $region8: #{policy_forward.1} parent=0 // pred_region
    _
  $region9: #{policy_forward.1} parent=0 // pred_fallthru
    _
  // Predicated region
  $region10: #{policy_forward.1} parent=0 // pred_check
    _
  $region11: #{policy_forward.1} parent=0 // pred_check_branch
    %17 = sbr.rel (0) target = $region13
  $region12: #{policy_forward.1} parent=0 // pred_region
    _
  $region13: #{policy_forward.1} parent=0 // pred_fallthru
    _
  // Predicated region
  $region14: #{policy_forward.1} parent=0 // pred_check
    _
  $region15: #{policy_forward.1} parent=0 // pred_check_branch
    %19 = sbr.rel (0) target = $region17
  $region16: #{policy_forward.1} parent=0 // pred_region
    _
  $region17: #{policy_forward.1} parent=0 // pred_fallthru
    _
  // Predicated region
  $region18: #{policy_forward.1} parent=0 // pred_check
    _
  $region19: #{policy_forward.1} parent=0 // pred_check_branch
    %21 = sbr.rel (0) target = $region21
  $region20: #{policy_forward.1} parent=0 // pred_region
    _
  $region21: #{policy_forward.1} parent=0 // pred_fallthru
    _
  // Predicated region
  $region22: #{policy_forward.1} parent=0 // pred_check
    _
  $region23: #{policy_forward.1} parent=0 // pred_check_branch
    %23 = sbr.rel (0) target = $region25
  $region24: #{policy_forward.1} parent=0 // pred_region
    _
  $region25: #{policy_forward.1} parent=0 // pred_fallthru
    _
  // Predicated region
  $region26: #{policy_forward.1} parent=0 // pred_check
    _
  $region27: #{policy_forward.1} parent=0 // pred_check_branch
    %25 = sbr.rel (0) target = $region29
  $region28: #{policy_forward.1} parent=0 // pred_region
    _
  $region29: #{policy_forward.1} parent=0 // pred_fallthru
    _
  %v26 = vld [vmem:[%s0] sm:$0xf]
  %v27 = vld [vmem:[%s1] sm:$0xf]
  %v28 = vld [vmem:[%s1 + $0x4] sm:$0xf]
  %v29 = vld [vmem:[%s1 + $0x8] sm:$0xf]
  %v30 = vld [vmem:[%s1 + $0xc] sm:$0xf]
  %v31 = vld [vmem:[%s1 + $0x10] sm:$0xf]
  %v32 = vld [vmem:[%s1 + $0x14] sm:$0xf]
  %v33 = vld [vmem:[%s1 + $0x18] sm:$0xf]
  %v34 = vld [vmem:[%s1 + $0x1c] sm:$0xf]
  %v35 = vld [vmem:[%s1 + $0x20] sm:$0xf]
  %v36 = vld [vmem:[%s1 + $0x24] sm:$0xf]
  %v37 = vld [vmem:[%s1 + $0x28] sm:$0xf]
  %v38 = vld [vmem:[%s1 + $0x2c] sm:$0xf]
  %v39 = vld [vmem:[%s1 + $0x30] sm:$0xf]
  %v40 = vld [vmem:[%s1 + $0x34] sm:$0xf]
  %v41 = vld [vmem:[%s1 + $0x38] sm:$0xf]
  %v42 = vld [vmem:[%s1 + $0x3c] sm:$0xf]
  %v43 = vld [vmem:[%s2] sm:$0x1]
  %v45 = vperm.slane %v43, 0
  %v63 = vunpack.c.l.b16 %v27
  %v64 = vunpack.c.l.b16 %v28
  %v65 = vunpack.c.l.b16 %v29
  %v66 = vunpack.c.l.b16 %v30
  %v67 = vunpack.c.l.b16 %v31
  %v68 = vunpack.c.l.b16 %v32
  %v69 = vunpack.c.l.b16 %v33
  %v70 = vunpack.c.l.b16 %v34
  %v71 = vunpack.c.l.b16 %v35
  %v72 = vunpack.c.l.b16 %v36
  %v73 = vunpack.c.l.b16 %v37
  %v74 = vunpack.c.l.b16 %v38
  %v75 = vunpack.c.l.b16 %v39
  %v76 = vunpack.c.l.b16 %v40
  %v77 = vunpack.c.l.b16 %v41
  %v78 = vunpack.c.l.b16 %v42
  %v79 = vpack.c.b16 %v64, %v63
  %v80 = vpack.c.b16 %v66, %v65
  %v81 = vpack.c.b16 %v68, %v67
  %v82 = vpack.c.b16 %v70, %v69
  %v83 = vpack.c.b16 %v72, %v71
  %v84 = vpack.c.b16 %v74, %v73
  %v85 = vpack.c.b16 %v76, %v75
  %v86 = vpack.c.b16 %v78, %v77
  %95 = vmatpush.bf16.msra.mxu0 %v86
  %96 = vmatpush.bf16.msra.mxu0 %v85
  %97 = vmatpush.bf16.msra.mxu0 %v84
  %98 = vmatpush.bf16.msra.mxu0 %v83
  %99 = vmatpush.bf16.msra.mxu0 %v82
  %100 = vmatpush.bf16.msra.mxu0 %v81
  %101 = vmatpush.bf16.msra.mxu0 %v80
  %102 = vmatpush.bf16.msra.mxu0 %v79
  %103 = vmatmul.bf16.gmra.mxu0 %v26
  %v104 = vpop.f32.mrf.mxu0
  %v105 = vadd.f32 %v45, %v104
  %v106 = vpop.f32.mrf.mxu0
  %107 = vdwg.mxu0
  %v108 = vtanh.pop %v105
  %v109 = vpack.c.bf16 %v108, %v108
  %v110 = vld [vmem:[%s3] sm:$0xf]
  %v111 = vld [vmem:[%s3 + $0x4] sm:$0xf]
  %v112 = vld [vmem:[%s3 + $0x8] sm:$0xf]
  %v113 = vld [vmem:[%s3 + $0xc] sm:$0xf]
  %v114 = vld [vmem:[%s3 + $0x10] sm:$0xf]
  %v115 = vld [vmem:[%s3 + $0x14] sm:$0xf]
  %v116 = vld [vmem:[%s3 + $0x18] sm:$0xf]
  %v117 = vld [vmem:[%s3 + $0x1c] sm:$0xf]
  %v118 = vld [vmem:[%s3 + $0x20] sm:$0xf]
  %v119 = vld [vmem:[%s3 + $0x24] sm:$0xf]
  %v120 = vld [vmem:[%s3 + $0x28] sm:$0xf]
  %v121 = vld [vmem:[%s3 + $0x2c] sm:$0xf]
  %v122 = vld [vmem:[%s3 + $0x30] sm:$0xf]
  %v123 = vld [vmem:[%s3 + $0x34] sm:$0xf]
  %v124 = vld [vmem:[%s3 + $0x38] sm:$0xf]
  %v125 = vld [vmem:[%s3 + $0x3c] sm:$0xf]
  %v126 = vld [vmem:[%s4] sm:$0x1]
  %v128 = vperm.slane %v126, 0
  %v146 = vunpack.c.l.b16 %v110
  %v147 = vunpack.c.l.b16 %v111
  %v148 = vunpack.c.l.b16 %v112
  %v149 = vunpack.c.l.b16 %v113
  %v150 = vunpack.c.l.b16 %v114
  %v151 = vunpack.c.l.b16 %v115
  %v152 = vunpack.c.l.b16 %v116
  %v153 = vunpack.c.l.b16 %v117
  %v154 = vunpack.c.l.b16 %v118
  %v155 = vunpack.c.l.b16 %v119
  %v156 = vunpack.c.l.b16 %v120
  %v157 = vunpack.c.l.b16 %v121
  %v158 = vunpack.c.l.b16 %v122
  %v159 = vunpack.c.l.b16 %v123
  %v160 = vunpack.c.l.b16 %v124
  %v161 = vunpack.c.l.b16 %v125
  %v162 = vpack.c.b16 %v147, %v146
  %v163 = vpack.c.b16 %v149, %v148
  %v164 = vpack.c.b16 %v151, %v150
  %v165 = vpack.c.b16 %v153, %v152
  %v166 = vpack.c.b16 %v155, %v154
  %v167 = vpack.c.b16 %v157, %v156
  %v168 = vpack.c.b16 %v159, %v158
  %v169 = vpack.c.b16 %v161, %v160
  %178 = vmatpush.bf16.msra.mxu0 %v169
  %179 = vmatpush.bf16.msra.mxu0 %v168
  %180 = vmatpush.bf16.msra.mxu0 %v167
  %181 = vmatpush.bf16.msra.mxu0 %v166
  %182 = vmatpush.bf16.msra.mxu0 %v165
  %183 = vmatpush.bf16.msra.mxu0 %v164
  %184 = vmatpush.bf16.msra.mxu0 %v163
  %185 = vmatpush.bf16.msra.mxu0 %v162
  %186 = vmatmul.bf16.gmra.mxu0 %v109
  %v187 = vpop.f32.mrf.mxu0
  %v188 = vadd.f32 %v128, %v187
  %v189 = vpop.f32.mrf.mxu0
  %190 = vdwg.mxu0
  %v191 = vtanh.pop %v188
  %v192 = vpack.c.bf16 %v191, %v191
  %v193 = vld [vmem:[%s5] sm:$0xf]
  %v194 = vld [vmem:[%s5 + $0x4] sm:$0xf]
  %v195 = vld [vmem:[%s5 + $0x8] sm:$0xf]
  %v196 = vld [vmem:[%s5 + $0xc] sm:$0xf]
  %v197 = vld [vmem:[%s5 + $0x10] sm:$0xf]
  %v198 = vld [vmem:[%s5 + $0x14] sm:$0xf]
  %v199 = vld [vmem:[%s5 + $0x18] sm:$0xf]
  %v200 = vld [vmem:[%s5 + $0x1c] sm:$0xf]
  %v201 = vld [vmem:[%s5 + $0x20] sm:$0xf]
  %v202 = vld [vmem:[%s5 + $0x24] sm:$0xf]
  %v203 = vld [vmem:[%s5 + $0x28] sm:$0xf]
  %v204 = vld [vmem:[%s5 + $0x2c] sm:$0xf]
  %v205 = vld [vmem:[%s5 + $0x30] sm:$0xf]
  %v206 = vld [vmem:[%s5 + $0x34] sm:$0xf]
  %v207 = vld [vmem:[%s5 + $0x38] sm:$0xf]
  %v208 = vld [vmem:[%s5 + $0x3c] sm:$0xf]
  %v209 = vld [vmem:[%s6] sm:$0x1]
  %v211 = vperm.slane %v209, 0
  %v229 = vunpack.c.l.b16 %v193
  %v230 = vunpack.c.l.b16 %v194
  %v231 = vunpack.c.l.b16 %v195
  %v232 = vunpack.c.l.b16 %v196
  %v233 = vunpack.c.l.b16 %v197
  %v234 = vunpack.c.l.b16 %v198
  %v235 = vunpack.c.l.b16 %v199
  %v236 = vunpack.c.l.b16 %v200
  %v237 = vunpack.c.l.b16 %v201
  %v238 = vunpack.c.l.b16 %v202
  %v239 = vunpack.c.l.b16 %v203
  %v240 = vunpack.c.l.b16 %v204
  %v241 = vunpack.c.l.b16 %v205
  %v242 = vunpack.c.l.b16 %v206
  %v243 = vunpack.c.l.b16 %v207
  %v244 = vunpack.c.l.b16 %v208
  %v245 = vpack.c.b16 %v230, %v229
  %v246 = vpack.c.b16 %v232, %v231
  %v247 = vpack.c.b16 %v234, %v233
  %v248 = vpack.c.b16 %v236, %v235
  %v249 = vpack.c.b16 %v238, %v237
  %v250 = vpack.c.b16 %v240, %v239
  %v251 = vpack.c.b16 %v242, %v241
  %v252 = vpack.c.b16 %v244, %v243
  %261 = vmatpush.bf16.msra.mxu0 %v252
  %262 = vmatpush.bf16.msra.mxu0 %v251
  %263 = vmatpush.bf16.msra.mxu0 %v250
  %264 = vmatpush.bf16.msra.mxu0 %v249
  %265 = vmatpush.bf16.msra.mxu0 %v248
  %266 = vmatpush.bf16.msra.mxu0 %v247
  %267 = vmatpush.bf16.msra.mxu0 %v246
  %268 = vmatpush.bf16.msra.mxu0 %v245
  %269 = vmatmul.bf16.gmra.mxu0 %v192
  %v270 = vpop.f32.mrf.mxu0
  %v271 = vadd.f32 %v211, %v270
  %v272 = vpop.f32.mrf.mxu0
  %273 = vdwg.mxu0
  %274 = vst [vmem:[%s7] sm:$0xff] %v271
  // Predicated region
  $region30: #{policy_forward.1} parent=0 // pred_check
    _
  $region31: #{policy_forward.1} parent=0 // pred_check_branch
    %276 = sbr.rel (0) target = $region33
  $region32: #{policy_forward.1} parent=0 // pred_region
    _
  $region33: #{policy_forward.1} parent=0 // pred_fallthru
    _
  // Predicated region
  $region34: #{policy_forward.1} parent=0 // pred_check
    _
  $region35: #{policy_forward.1} parent=0 // pred_check_branch
    %278 = sbr.rel (0) target = $region37
  $region36: #{policy_forward.1} parent=0 // pred_region
    _
  $region37: #{policy_forward.1} parent=0 // pred_fallthru
    _

</llo_original>
